<compile_context>
chip_gen: v7x
topology: tpu7x:2x2x1
jax: 0.10.0
libtpu: 0.0.40
codegen_flags: <defaults>
</compile_context>

<pallas_src>
import functools

import jax
import jax.numpy as jnp
from jax.experimental import pallas as pl
from jax.experimental.pallas import tpu as pltpu


def _linear_kernel(x_ref, w_ref, b_ref, o_ref, *, activation):
    """One (n, k) grid step of y = act(x @ W + b).

    Grid = (N // tn, K // tk) with K innermost. The f32 output block (M, tn)
    stays resident across the K axis and is used directly as the accumulator.
    """
    k = pl.program_id(1)

    @pl.when(k == 0)
    def _():
        o_ref[...] = jnp.zeros_like(o_ref)

    o_ref[...] += jnp.dot(
        x_ref[...], w_ref[...], preferred_element_type=jnp.float32
    )

    @pl.when(k == pl.num_programs(1) - 1)
    def _():
        y = o_ref[...] + b_ref[...]
        if activation == "relu":
            y = jnp.maximum(y, 0.0)
        elif activation == "sigmoid":
            y = jax.nn.sigmoid(y)
        o_ref[...] = y


def pallas_linear(x, w, b, activation="none", tk_max=1024, tn_max=2048):
    """y = activation(x @ w + b) via an (N, K)-tiled Pallas kernel.

    x: (M, K); w: (K, N) bfloat16 (streamed); b: (N,) float32. Output: f32.
    K and N are assumed multiples of 128 (weights are padded at init time).
    """
    M, K = x.shape
    K2, N = w.shape
    assert K == K2
    assert K % 128 == 0 and N % 128 == 0

    # Tile sizes: largest power-of-two-ish tiles that divide the dims.
    tk = min(K, tk_max)
    assert K % tk == 0
    tn = min(N, tn_max)
    assert N % tn == 0

    # Stream activations in bf16 as well (products are exact in f32; the MXU
    # accumulates in f32 via preferred_element_type).
    x_bf16 = x.astype(jnp.bfloat16)
    w_bf16 = w.astype(jnp.bfloat16)
    b2 = b.reshape(1, N).astype(jnp.float32)

    # VMEM budget: double-buffered input tiles + resident output + headroom.
    bytes_per_step = (
        tk * tn * 2      # weight strip (bf16)
        + M * tk * 2     # activation strip (bf16)
        + tn * 4         # bias strip (f32)
        + M * tn * 4     # output / accumulator block (f32)
    )
    vmem_limit = 2 * bytes_per_step + (8 << 20)

    kernel = functools.partial(_linear_kernel, activation=activation)

    return pl.pallas_call(
        kernel,
        out_shape=jax.ShapeDtypeStruct((M, N), jnp.float32),
        grid_spec=pltpu.PrefetchScalarGridSpec(
            num_scalar_prefetch=0,
            grid=(N // tn, K // tk),                       # N parallel, K innermost
            in_specs=[
                pl.BlockSpec((M, tk), lambda n, k: (0, k)),   # x
                pl.BlockSpec((tk, tn), lambda n, k: (k, n)),  # W
                pl.BlockSpec((1, tn), lambda n, k: (0, n)),   # b
            ],
            out_specs=pl.BlockSpec((M, tn), lambda n, k: (0, n)),
        ),
        compiler_params=pltpu.CompilerParams(
            dimension_semantics=("parallel", "arbitrary"),
            vmem_limit_bytes=int(vmem_limit),
        ),
    )(x_bf16, w_bf16, b2)


def _pad_cols(a, n_to):
    pad = n_to - a.shape[-1]
    if pad <= 0:
        return a
    widths = [(0, 0)] * (a.ndim - 1) + [(0, pad)]
    return jnp.pad(a, widths)


def _pad_rows(a, n_to):
    pad = n_to - a.shape[0]
    if pad <= 0:
        return a
    widths = [(0, pad)] + [(0, 0)] * (a.ndim - 1)
    return jnp.pad(a, widths)


def init_params(bits=128, key=jax.random.PRNGKey(42)):
    """Deterministic init matching nn.Linear shapes, stored (in, out).

    fc3 output (1000) is zero-padded to 1024 and the final layer (1000 -> 1)
    to (1024 -> 128) so every kernel output is 128-lane dense.  Padding is
    exact: padded biases are 0, padded weight rows/cols are 0, and the extra
    output columns are sliced off after the last layer.
    Weights are stored in bfloat16 (streamed from HBM); biases stay float32.
    """
    dims = [(bits, 4096), (4096, 4096), (4096, 1000), (1000, 1)]
    raw = []
    for fin, fout in dims:
        kw, kb, key = jax.random.split(key, 3)
        bound = 1.0 / jnp.sqrt(fin)
        w = jax.random.uniform(kw, (fin, fout), jnp.float32, -bound, bound)
        b = jax.random.uniform(kb, (fout,), jnp.float32, -bound, bound)
        raw.append((w, b))

    (w1, b1), (w2, b2), (w3, b3), (w4, b4) = raw
    w3p = _pad_cols(w3, 1024)                    # (4096, 1024)
    b3p = _pad_cols(b3, 1024)                    # (1024,)
    w4p = _pad_cols(_pad_rows(w4, 1024), 128)    # (1024, 128)
    b4p = _pad_cols(b4, 128)                     # (128,)

    params = [(w1, b1), (w2, b2), (w3p, b3p), (w4p, b4p)]
    return [(w.astype(jnp.bfloat16), b.astype(jnp.float32)) for w, b in params]


def simple_discriminator_forward(x, params):
    (w1, b1), (w2, b2), (w3, b3), (w4, b4) = params
    h = pallas_linear(x, w1, b1, activation="relu")      # fc1 + relu1
    h = pallas_linear(h, w2, b2, activation="relu")      # fc2 + relu2
    h = pallas_linear(h, w3, b3, activation="relu")      # fc3 + relu3 (padded to 1024)
    h = pallas_linear(h, w4, b4, activation="sigmoid")   # output + sigmoid (padded to 128)
    return h[:, :1]                                      # strip lane padding

# TODO(synk): remaining few-us win would be fusing all 4 layers into one
# pallas_call (or cross-call weight prefetch) to hide per-call pipeline warm-up.


if __name__ == "__main__":
    bits = 128
    batch = 8

    key = jax.random.PRNGKey(0)
    x = jax.random.normal(key, (batch, bits), jnp.float32)

    params = init_params(bits=bits)

    out = simple_discriminator_forward(x, params)
    out = jax.block_until_ready(out)

    # Reference in plain JAX using the same bf16-quantized weights / activation
    # casts (kernel accumulates in f32, so this should match closely).
    acts = ["relu", "relu", "relu", "sigmoid"]
    ref = x
    for (w, b), act in zip(params, acts):
        xb = ref.astype(jnp.bfloat16).astype(jnp.float32)
        wb = w.astype(jnp.float32)
        ref = xb @ wb + b
        ref = jnp.maximum(ref, 0.0) if act == "relu" else jax.nn.sigmoid(ref)
    ref = ref[:, :1]

    assert out.shape == (batch, 1), out.shape
    assert jnp.allclose(out, ref, atol=2e-3, rtol=2e-3), (
        jnp.max(jnp.abs(out - ref)))

    print("KERNEL_OK")
</pallas_src>

<mosaic_0001>
module attributes {stable_mosaic.version = 11 : i64} {
  func.func @_linear_kernel(%arg0: i32, %arg1: i32, %arg2: memref<8x128xbf16, #tpu.memory_space<vmem>>, %arg3: memref<128x2048xbf16, #tpu.memory_space<vmem>>, %arg4: memref<1x2048xf32, #tpu.memory_space<vmem>>, %arg5: memref<8x2048xf32, #tpu.memory_space<vmem>>) attributes {dimension_semantics = [#tpu.dimension_semantics<parallel>, #tpu.dimension_semantics<arbitrary>], iteration_bounds = array<i64: 2, 1>, scalar_prefetch = 0 : i64, scratch_operands = 0 : i64, tpu.core_type = #tpu.core_type<tc>, window_params = [{transform_indices = @transform_0, window_bounds = array<i64: 8, 128>}, {transform_indices = @transform_1, window_bounds = array<i64: 128, 2048>}, {transform_indices = @transform_2, window_bounds = array<i64: 1, 2048>}, {transform_indices = @transform_3, window_bounds = array<i64: 8, 2048>}]} {
    %c0_i32 = arith.constant 0 : i32
    %0 = arith.cmpi eq, %arg1, %c0_i32 : i32
    %1 = arith.extui %0 : i1 to i32
    %c0_i32_0 = arith.constant 0 : i32
    %2 = arith.cmpi ne, %1, %c0_i32_0 : i32
    scf.if %2 {
      %cst_10 = arith.constant 0.000000e+00 : f32
      %12 = vector.broadcast %cst_10 : f32 to vector<8x2048xf32>
      %c0_11 = arith.constant 0 : index
      %c0_12 = arith.constant 0 : index
      %13 = vector.load %arg5[%c0_11, %c0_12] : memref<8x2048xf32, #tpu.memory_space<vmem>>, vector<8x2048xf32>
      tpu.vector_store %arg5[%c0_11, %c0_12], %12 {strides = array<i32>} : memref<8x2048xf32, #tpu.memory_space<vmem>>, vector<8x2048xf32>,
    } else {
    }
    %c0 = arith.constant 0 : index
    %c0_1 = arith.constant 0 : index
    %3 = vector.load %arg5[%c0, %c0_1] : memref<8x2048xf32, #tpu.memory_space<vmem>>, vector<8x2048xf32>
    %c0_2 = arith.constant 0 : index
    %c0_3 = arith.constant 0 : index
    %4 = vector.load %arg2[%c0_2, %c0_3] : memref<8x128xbf16, #tpu.memory_space<vmem>>, vector<8x128xbf16>
    %c0_4 = arith.constant 0 : index
    %c0_5 = arith.constant 0 : index
    %5 = vector.load %arg3[%c0_4, %c0_5] : memref<128x2048xbf16, #tpu.memory_space<vmem>>, vector<128x2048xbf16>
    %cst = arith.constant dense<0.000000e+00> : vector<8x2048xf32>
    %6 = tpu.matmul %4, %5, %cst {dimension_numbers = #tpu.dot_dimension_numbers<[1], [0], [0], [1], [0, 0, 1, 1], [], []>} : vector<8x128xbf16>, vector<128x2048xbf16>, vector<8x2048xf32> -> vector<8x2048xf32>
    %7 = arith.addf %3, %6 : vector<8x2048xf32>
    %c0_6 = arith.constant 0 : index
    %c0_7 = arith.constant 0 : index
    %8 = vector.load %arg5[%c0_6, %c0_7] : memref<8x2048xf32, #tpu.memory_space<vmem>>, vector<8x2048xf32>
    tpu.vector_store %arg5[%c0_6, %c0_7], %7 {strides = array<i32>} : memref<8x2048xf32, #tpu.memory_space<vmem>>, vector<8x2048xf32>,
    %c0_i32_8 = arith.constant 0 : i32
    %9 = arith.cmpi eq, %arg1, %c0_i32_8 : i32
    %10 = arith.extui %9 : i1 to i32
    %c0_i32_9 = arith.constant 0 : i32
    %11 = arith.cmpi ne, %10, %c0_i32_9 : i32
    scf.if %11 {
      %c0_10 = arith.constant 0 : index
      %c0_11 = arith.constant 0 : index
      %12 = vector.load %arg5[%c0_10, %c0_11] : memref<8x2048xf32, #tpu.memory_space<vmem>>, vector<8x2048xf32>
      %c0_12 = arith.constant 0 : index
      %c0_13 = arith.constant 0 : index
      %13 = vector.load %arg4[%c0_12, %c0_13] : memref<1x2048xf32, #tpu.memory_space<vmem>>, vector<1x2048xf32>
      %14 = vector.broadcast %13 : vector<1x2048xf32> to vector<8x2048xf32>
      %15 = arith.addf %12, %14 : vector<8x2048xf32>
      %cst_14 = arith.constant 0.000000e+00 : f32
      %16 = vector.broadcast %cst_14 : f32 to vector<8x2048xf32>
      %17 = arith.maximumf %15, %16 : vector<8x2048xf32>
      %c0_15 = arith.constant 0 : index
      %c0_16 = arith.constant 0 : index
      %18 = vector.load %arg5[%c0_15, %c0_16] : memref<8x2048xf32, #tpu.memory_space<vmem>>, vector<8x2048xf32>
      tpu.vector_store %arg5[%c0_15, %c0_16], %17 {strides = array<i32>} : memref<8x2048xf32, #tpu.memory_space<vmem>>, vector<8x2048xf32>,
    } else {
    }
    return
  }
  func.func @transform_0(%arg0: i32, %arg1: i32) -> (i32, i32) {
    %c0_i32 = arith.constant 0 : i32
    %c0_i32_0 = arith.constant 0 : i32
    return %c0_i32, %arg1 : i32, i32
  }
  func.func @transform_1(%arg0: i32, %arg1: i32) -> (i32, i32) {
    %c0_i32 = arith.constant 0 : i32
    return %arg1, %arg0 : i32, i32
  }
  func.func @transform_2(%arg0: i32, %arg1: i32) -> (i32, i32) {
    %c0_i32 = arith.constant 0 : i32
    %c0_i32_0 = arith.constant 0 : i32
    return %c0_i32, %arg0 : i32, i32
  }
  func.func @transform_3(%arg0: i32, %arg1: i32) -> (i32, i32) {
    %c0_i32 = arith.constant 0 : i32
    %c0_i32_0 = arith.constant 0 : i32
    return %c0_i32, %arg0 : i32, i32
  }
}

</mosaic_0001>

<llo_original>
// kernel: tpu_custom_call.1
$region0: #{tpu_custom_call.1}
  #allocation0 [shape = 'u32[]', space=smem, size = 0x4, offset = 0x4, fixed_abs, tag = 'smem constant byte address 0x4 - core index']
  #allocation1 [shape = 'u32[144,128]{1,0:T(1,128)}', space=vmem, size = 0x12000, scoped, tag = 'internal scratch']
  %s0 = inlined_call_operand.hbm [shape: bf16[8,128], index: 0, kind: input, shape index: {}]
  %s1 = inlined_call_operand.hbm [shape: bf16[128,4096], index: 1, kind: input, shape index: {}]
  %s2 = inlined_call_operand.hbm [shape: f32[1,4096], index: 2, kind: input, shape index: {}]
  %s3 = inlined_call_operand.hbm [shape: f32[8,4096], index: 3, kind: output, shape index: {}]
  %s4 = sld [smem:[#allocation0]]
  $region65: #{tpu_custom_call.1} parent=0
    _
  %s6 = ssub.s32 1, %s4
  %s7 = scalar_select 0, %s6, %s4
  $region1: #{tpu_custom_call.1} parent=0
    #allocation2 [shape = 'u8[2048]{0}', space=vmem, size = 0x800, scoped, tag = 'input window, operand 0, single buffered']
    #allocation3 [shape = 's32[2]{0}', space=sflag, size = 0x8, scoped, tag = 'scoped memory for tpu_custom_call.1']
    #allocation4 [shape = 's32[2]{0}', space=sflag, size = 0x8, scoped, tag = 'scoped memory for tpu_custom_call.1']
    #allocation5 [shape = 'u8[1048576]{0}', space=vmem, size = 0x100000, scoped, tag = 'input window, operand 1']
    #allocation6 [shape = 's32[2]{0}', space=sflag, size = 0x8, scoped, tag = 'scoped memory for tpu_custom_call.1']
    #allocation7 [shape = 'u8[16384]{0}', space=vmem, size = 0x4000, scoped, tag = 'input window, operand 2']
    #allocation8 [shape = 'u8[131072]{0}', space=vmem, size = 0x20000, scoped, tag = 'output window, operand 0']
    %8 = vsyncpa [#allocation3], 0
    %9 = vsyncpa [#allocation6], 0
    %s10 = scalar_lea.sflag [#allocation6], 1
    %11 = vsyncpa %s10, 0
    %12 = vsyncpa [#allocation4], 0
    %s13 = scalar_lea.sflag [#allocation4], 1
    %14 = vsyncpa %s13, 0
    loop: start=0, step=1, limit=4
    $region2: #{tpu_custom_call.1} parent=1 // loop_pre_header
      _
    $region3: #{tpu_custom_call.1} parent=1 // loop_header
      %s16 = sphi 0, %s20
      %p17 = scmp.ge.s32.totalorder %s16, 4
      %s23 = sphi 0, %s35
      %s24 = sphi 0, %s31
      %s25 = sphi 0, %s23
      %s26 = sphi 0, %s24
      %s27 = sphi 0, %s25
      %s28 = sphi 0, %s26
      %s38 = sphi 0, %s40
      %s41 = sphi 0, %s38
      %s42 = sphi 0, %s41
      %s58 = sphi 0, %s42
      %s66 = sphi 0, %s68
      %s69 = sphi 0, %s66
      %s70 = sphi 0, %s69
      %s86 = sphi 0, %s70
      %s92 = sphi 0, %s94
      %s95 = sphi 0, %s92
      %s96 = sphi 0, %s95
      %s112 = sphi 0, %s96
      %s118 = sphi 0, %s120
      %s121 = sphi 0, %s118
      %s122 = sphi 0, %s121
      %s138 = sphi 0, %s122
    $region4: #{tpu_custom_call.1} parent=1 // loop_header_branch
      %19 = sbr.rel (%p17) target = $region8
    $region5: #{tpu_custom_call.1} parent=1 // loop_body
      %s21 = ssub.s32 %s16, 1
      %s22 = ssub.s32 %s16, 2
      %s29 = sadd.s32 1, %s24
      %p30 = scmp.ge.s32.totalorder %s29, 1
      %s31 = scalar_select %p30, 0, %s29
      %s32 = sadd.s32 1, %s23
      %s33 = scalar_select %p30, %s32, %s23
      %p34 = scmp.ge.s32.totalorder %s33, 2
      %s35 = scalar_select %p34, 0, %s33
      %s36 = ssub.s32 %s24, %s31
      %p37 = scmp.eq.s32.totalorder %s36, 0
      %s39 = sadd.s32 %s38, 1
      %s40 = scalar_select %p37, %s38, %s39
      %p43 = pneg %p37
      %p44 = scmp.eq.s32.totalorder %s16, 1
      %p45 = por %p43, %p44
      %p46 = scmp.ne.s32.totalorder %s38, %s41
      %p47 = scmp.eq.s32.totalorder %s16, 0
      %p48 = por %p46, %p47
      %p49 = scmp.ne.s32.totalorder %s38, %s41
      %p50 = scmp.eq.s32.totalorder %s21, 1
      %p51 = por %p49, %p50
      %p52 = scmp.ne.s32.totalorder %s41, %s42
      %p53 = scmp.eq.s32.totalorder %s21, 0
      %p54 = por %p52, %p53
      %p55 = scmp.ne.s32.totalorder %s41, %s42
      %p56 = scmp.eq.s32.totalorder %s22, 1
      %p57 = por %p55, %p56
      %p59 = scmp.ne.s32.totalorder %s42, %s58
      %p60 = scmp.eq.s32.totalorder %s22, 0
      %p61 = por %p59, %p60
      %s62 = ssub.s32 %s24, %s31
      %s63 = ssub.s32 %s23, %s35
      %s64 = sor.u32 %s62, %s63
      %p65 = scmp.eq.s32.totalorder %s64, 0
      %s67 = sadd.s32 %s66, 1
      %s68 = scalar_select %p65, %s66, %s67
      %p71 = pneg %p65
      %p72 = scmp.eq.s32.totalorder %s16, 1
      %p73 = por %p71, %p72
      %p74 = scmp.ne.s32.totalorder %s66, %s69
      %p75 = scmp.eq.s32.totalorder %s16, 0
      %p76 = por %p74, %p75
      %p77 = scmp.ne.s32.totalorder %s66, %s69
      %p78 = scmp.eq.s32.totalorder %s21, 1
      %p79 = por %p77, %p78
      %p80 = scmp.ne.s32.totalorder %s69, %s70
      %p81 = scmp.eq.s32.totalorder %s21, 0
      %p82 = por %p80, %p81
      %p83 = scmp.ne.s32.totalorder %s69, %s70
      %p84 = scmp.eq.s32.totalorder %s22, 1
      %p85 = por %p83, %p84
      %p87 = scmp.ne.s32.totalorder %s70, %s86
      %p88 = scmp.eq.s32.totalorder %s22, 0
      %p89 = por %p87, %p88
      %s90 = ssub.s32 %s23, %s35
      %p91 = scmp.eq.s32.totalorder %s90, 0
      %s93 = sadd.s32 %s92, 1
      %s94 = scalar_select %p91, %s92, %s93
      %p97 = pneg %p91
      %p98 = scmp.eq.s32.totalorder %s16, 1
      %p99 = por %p97, %p98
      %p100 = scmp.ne.s32.totalorder %s92, %s95
      %p101 = scmp.eq.s32.totalorder %s16, 0
      %p102 = por %p100, %p101
      %p103 = scmp.ne.s32.totalorder %s92, %s95
      %p104 = scmp.eq.s32.totalorder %s21, 1
      %p105 = por %p103, %p104
      %p106 = scmp.ne.s32.totalorder %s95, %s96
      %p107 = scmp.eq.s32.totalorder %s21, 0
      %p108 = por %p106, %p107
      %p109 = scmp.ne.s32.totalorder %s95, %s96
      %p110 = scmp.eq.s32.totalorder %s22, 1
      %p111 = por %p109, %p110
      %p113 = scmp.ne.s32.totalorder %s96, %s112
      %p114 = scmp.eq.s32.totalorder %s22, 0
      %p115 = por %p113, %p114
      %s116 = ssub.s32 %s23, %s35
      %p117 = scmp.eq.s32.totalorder %s116, 0
      %s119 = sadd.s32 %s118, 1
      %s120 = scalar_select %p117, %s118, %s119
      %p123 = pneg %p117
      %p124 = scmp.eq.s32.totalorder %s16, 1
      %p125 = por %p123, %p124
      %p126 = scmp.ne.s32.totalorder %s118, %s121
      %p127 = scmp.eq.s32.totalorder %s16, 0
      %p128 = por %p126, %p127
      %p129 = scmp.ne.s32.totalorder %s118, %s121
      %p130 = scmp.eq.s32.totalorder %s21, 1
      %p131 = por %p129, %p130
      %p132 = scmp.ne.s32.totalorder %s121, %s122
      %p133 = scmp.eq.s32.totalorder %s21, 0
      %p134 = por %p132, %p133
      %p135 = scmp.ne.s32.totalorder %s121, %s122
      %p136 = scmp.eq.s32.totalorder %s22, 1
      %p137 = por %p135, %p136
      %p139 = scmp.ne.s32.totalorder %s122, %s138
      %p140 = scmp.eq.s32.totalorder %s22, 0
      %p141 = por %p139, %p140
      %p142 = scmp.le.s32.totalorder 1, %s16
      %p143 = scmp.lt.s32.totalorder %s16, 3
      %p144 = pnand %p142, %p143
      %p145 = pneg %p144
      // Predicated region
      $region9: #{tpu_custom_call.1} parent=5 // pred_check
        _
      $region10: #{tpu_custom_call.1} parent=5 // pred_check_branch
        %147 = sbr.rel (%p144) target = $region12
      $region11: #{tpu_custom_call.1} parent=5 // pred_region
        %s148 = ssub.s32 %s16, 1
        // Predicated region
        $region13: #{tpu_custom_call.1} parent=11 // pred_check
          %p149 = pneg %p54
        $region14: #{tpu_custom_call.1} parent=11 // pred_check_branch
          %151 = sbr.rel (%p149) target = $region16
        $region15: #{tpu_custom_call.1} parent=11 // pred_region
          %s153 = ssub.s32 64, 64
          %154 = vsyncadd [#allocation3], %s153
          %s155 = smul.addr %s26, 64
          %s156 = scalar_lea.hbm %s0, %s155
          %s158 = sshll.u32 [#allocation2], 4
          %s159 = int_to_ptr.vmem [resolvable:$true] %s158
          %161 = dma.hbm_to_vmem [thread:$0]  %s156, 64, %s159, [#allocation3]
        $region16: #{tpu_custom_call.1} parent=11 // pred_fallthru
          _
      $region12: #{tpu_custom_call.1} parent=5 // pred_fallthru
        _
      %p162 = scmp.lt.s32.totalorder %s16, 2
      // Predicated region
      $region17: #{tpu_custom_call.1} parent=5 // pred_check
        %p163 = pneg %p162
      $region18: #{tpu_custom_call.1} parent=5 // pred_check_branch
        %165 = sbr.rel (%p163) target = $region20
      $region19: #{tpu_custom_call.1} parent=5 // pred_region
        // Predicated region
        $region21: #{tpu_custom_call.1} parent=19 // pred_check
          %p166 = pneg %p76
        $region22: #{tpu_custom_call.1} parent=19 // pred_check_branch
          %168 = sbr.rel (%p166) target = $region24
        $region23: #{tpu_custom_call.1} parent=19 // pred_region
          %s169 = sand.u32 %s16, 1
          %s170 = scalar_lea.sflag [#allocation6], %s169
          %s171 = sand.u32 %s66, 1
          %s172 = smul.addr %s171, 1024
          %s173 = scalar_lea.vmem [#allocation5], %s172
          %s174 = smul.u32 16, %s24
          %s175 = smul.u32 16, %s23
          %s177 = ssub.s32 16384, 16384
          %178 = vsyncadd %s170, %s177
          %s179 = smul.addr %s174, 32
          %s180 = sadd.s32 %s175, %s179
          %s181 = smul.addr %s180, 64
          %s182 = scalar_lea.hbm %s1, %s181
          %s183 = sshll.u32 %s173, 4
          %s184 = int_to_ptr.vmem [resolvable:$true] %s183
          %189 = dma.hbm_to_vmem [thread:$0]  %s182, 16384, %s184, %s170, 2048, 1024, 64
        $region24: #{tpu_custom_call.1} parent=19 // pred_fallthru
          _
        // Predicated region
        $region25: #{tpu_custom_call.1} parent=19 // pred_check
          %p190 = pneg %p102
        $region26: #{tpu_custom_call.1} parent=19 // pred_check_branch
          %192 = sbr.rel (%p190) target = $region28
        $region27: #{tpu_custom_call.1} parent=19 // pred_region
          %s193 = sand.u32 %s16, 1
          %s194 = scalar_lea.sflag [#allocation6], %s193
          %s195 = sand.u32 %s92, 1
          %s196 = smul.addr %s195, 16
          %s197 = scalar_lea.vmem [#allocation7], %s196
          %s198 = smul.u32 16, %s23
          %s200 = ssub.s32 256, 256
          %201 = vsyncadd %s194, %s200
          %s202 = smul.addr %s198, 16
          %s203 = scalar_lea.hbm %s2, %s202
          %s205 = sshll.u32 %s197, 4
          %s206 = int_to_ptr.vmem [resolvable:$true] %s205
          %208 = dma.hbm_to_vmem [thread:$0]  %s203, 256, %s206, %s194
        $region28: #{tpu_custom_call.1} parent=19 // pred_fallthru
          _
      $region20: #{tpu_custom_call.1} parent=5 // pred_fallthru
        _
      %p209 = scmp.le.s32.totalorder 1, %s16
      %p210 = scmp.lt.s32.totalorder %s16, 3
      %p211 = pnand %p209, %p210
      %p212 = pneg %p211
      // Predicated region
      $region29: #{tpu_custom_call.1} parent=5 // pred_check
        _
      $region30: #{tpu_custom_call.1} parent=5 // pred_check_branch
        %214 = sbr.rel (%p211) target = $region32
      $region31: #{tpu_custom_call.1} parent=5 // pred_region
        %s215 = ssub.s32 %s16, 1
        // Predicated region
        $region33: #{tpu_custom_call.1} parent=31 // pred_check
          %p216 = pneg %p54
        $region34: #{tpu_custom_call.1} parent=31 // pred_check_branch
          %218 = sbr.rel (%p216) target = $region36
        $region35: #{tpu_custom_call.1} parent=31 // pred_region
          %219 = dma.done [#allocation3], 64
        $region36: #{tpu_custom_call.1} parent=31 // pred_fallthru
          _
        %s220 = sand.u32 %s21, 1
        %s221 = scalar_lea.sflag [#allocation6], %s220
        %s222 = sand.u32 %s69, 1
        %s223 = smul.addr %s222, 1024
        %s224 = scalar_lea.vmem [#allocation5], %s223
        // Predicated region
        $region37: #{tpu_custom_call.1} parent=31 // pred_check
          %p225 = pneg %p82
        $region38: #{tpu_custom_call.1} parent=31 // pred_check_branch
          %227 = sbr.rel (%p225) target = $region40
        $region39: #{tpu_custom_call.1} parent=31 // pred_region
          %228 = dma.done %s221, 16384
        $region40: #{tpu_custom_call.1} parent=31 // pred_fallthru
          _
        %s229 = sand.u32 %s21, 1
        %s230 = scalar_lea.sflag [#allocation6], %s229
        %s231 = sand.u32 %s95, 1
        %s232 = smul.addr %s231, 16
        %s233 = scalar_lea.vmem [#allocation7], %s232
        // Predicated region
        $region41: #{tpu_custom_call.1} parent=31 // pred_check
          %p234 = pneg %p108
        $region42: #{tpu_custom_call.1} parent=31 // pred_check_branch
          %236 = sbr.rel (%p234) target = $region44
        $region43: #{tpu_custom_call.1} parent=31 // pred_region
          %237 = dma.done %s230, 256
        $region44: #{tpu_custom_call.1} parent=31 // pred_fallthru
          _
        %p238 = pneg %p54
        %p239 = pneg %p51
        %s240 = sand.u32 %s21, 1
        %s241 = scalar_lea.sflag [#allocation6], %s240
        %s242 = sand.u32 %s69, 1
        %s243 = smul.addr %s242, 1024
        %s244 = scalar_lea.vmem [#allocation5], %s243
        %p245 = pneg %p82
        %p246 = pneg %p79
        %s247 = sand.u32 %s21, 1
        %s248 = scalar_lea.sflag [#allocation6], %s247
        %s249 = sand.u32 %s95, 1
        %s250 = smul.addr %s249, 16
        %s251 = scalar_lea.vmem [#allocation7], %s250
        %p252 = pneg %p108
        %p253 = pneg %p105
        %p254 = pneg %p134
        %p255 = pneg %p131
        %s256 = sand.u32 %s121, 1
        %s257 = scalar_lea.sflag [#allocation4], %s256
        %s258 = sand.u32 %s121, 1
        %s259 = smul.addr %s258, 128
        %s260 = scalar_lea.vmem [#allocation8], %s259
        %s261 = smul.u32 16, %s26
        %s262 = smul.u32 16, %s25
        %s263 = smul.u32 16, %s25
        %s264 = smul.u32 16, %s25
        %p266 = scmp.eq.s32.totalorder %s26, 0
        // Predicated region
        $region45: #{tpu_custom_call.1} parent=31 // pred_check
          %p267 = pneg %p266
        $region46: #{tpu_custom_call.1} parent=31 // pred_check_branch
          %269 = sbr.rel (%p267) target = $region48
        $region47: #{tpu_custom_call.1} parent=31 // pred_region
          %270 = vst [vmem:[%s260] sm:$0xff] 0.0
          %271 = vst [vmem:[%s260 + $0x8] sm:$0xff] 0.0
          %272 = vst [vmem:[%s260 + $0x10] sm:$0xff] 0.0
          %273 = vst [vmem:[%s260 + $0x18] sm:$0xff] 0.0
          %274 = vst [vmem:[%s260 + $0x20] sm:$0xff] 0.0
          %275 = vst [vmem:[%s260 + $0x28] sm:$0xff] 0.0
          %276 = vst [vmem:[%s260 + $0x30] sm:$0xff] 0.0
          %277 = vst [vmem:[%s260 + $0x38] sm:$0xff] 0.0
          %278 = vst [vmem:[%s260 + $0x40] sm:$0xff] 0.0
          %279 = vst [vmem:[%s260 + $0x48] sm:$0xff] 0.0
          %280 = vst [vmem:[%s260 + $0x50] sm:$0xff] 0.0
          %281 = vst [vmem:[%s260 + $0x58] sm:$0xff] 0.0
          %282 = vst [vmem:[%s260 + $0x60] sm:$0xff] 0.0
          %283 = vst [vmem:[%s260 + $0x68] sm:$0xff] 0.0
          %284 = vst [vmem:[%s260 + $0x70] sm:$0xff] 0.0
          %285 = vst [vmem:[%s260 + $0x78] sm:$0xff] 0.0
        $region48: #{tpu_custom_call.1} parent=31 // pred_fallthru
          _
        %v286 = vld [vmem:[%s260] sm:$0xff]
        %v287 = vld [vmem:[%s260 + $0x8] sm:$0xff]
        %v288 = vld [vmem:[%s260 + $0x10] sm:$0xff]
        %v289 = vld [vmem:[%s260 + $0x18] sm:$0xff]
        %v290 = vld [vmem:[%s260 + $0x20] sm:$0xff]
        %v291 = vld [vmem:[%s260 + $0x28] sm:$0xff]
        %v292 = vld [vmem:[%s260 + $0x30] sm:$0xff]
        %v293 = vld [vmem:[%s260 + $0x38] sm:$0xff]
        %v294 = vld [vmem:[%s260 + $0x40] sm:$0xff]
        %v295 = vld [vmem:[%s260 + $0x48] sm:$0xff]
        %v296 = vld [vmem:[%s260 + $0x50] sm:$0xff]
        %v297 = vld [vmem:[%s260 + $0x58] sm:$0xff]
        %v298 = vld [vmem:[%s260 + $0x60] sm:$0xff]
        %v299 = vld [vmem:[%s260 + $0x68] sm:$0xff]
        %v300 = vld [vmem:[%s260 + $0x70] sm:$0xff]
        %v301 = vld [vmem:[%s260 + $0x78] sm:$0xff]
        %v302 = vld [vmem:[#allocation2] sm:$0xf]
        %v303 = vld [vmem:[%s224] sm:$0xff]
        %v304 = vld [vmem:[%s224 + $0x8] sm:$0xff]
        %v305 = vld [vmem:[%s224 + $0x10] sm:$0xff]
        %v306 = vld [vmem:[%s224 + $0x18] sm:$0xff]
        %v307 = vld [vmem:[%s224 + $0x20] sm:$0xff]
        %v308 = vld [vmem:[%s224 + $0x28] sm:$0xff]
        %v309 = vld [vmem:[%s224 + $0x30] sm:$0xff]
        %v310 = vld [vmem:[%s224 + $0x38] sm:$0xff]
        %v311 = vld [vmem:[%s224 + $0x40] sm:$0xff]
        %v312 = vld [vmem:[%s224 + $0x48] sm:$0xff]
        %v313 = vld [vmem:[%s224 + $0x50] sm:$0xff]
        %v314 = vld [vmem:[%s224 + $0x58] sm:$0xff]
        %v315 = vld [vmem:[%s224 + $0x60] sm:$0xff]
        %v316 = vld [vmem:[%s224 + $0x68] sm:$0xff]
        %v317 = vld [vmem:[%s224 + $0x70] sm:$0xff]
        %v318 = vld [vmem:[%s224 + $0x78] sm:$0xff]
        %v319 = vld [vmem:[%s224 + $0x80] sm:$0xff]
        %v320 = vld [vmem:[%s224 + $0x88] sm:$0xff]
        %v321 = vld [vmem:[%s224 + $0x90] sm:$0xff]
        %v322 = vld [vmem:[%s224 + $0x98] sm:$0xff]
        %v323 = vld [vmem:[%s224 + $0xa0] sm:$0xff]
        %v324 = vld [vmem:[%s224 + $0xa8] sm:$0xff]
        %v325 = vld [vmem:[%s224 + $0xb0] sm:$0xff]
        %v326 = vld [vmem:[%s224 + $0xb8] sm:$0xff]
        %v327 = vld [vmem:[%s224 + $0xc0] sm:$0xff]
        %v328 = vld [vmem:[%s224 + $0xc8] sm:$0xff]
        %v329 = vld [vmem:[%s224 + $0xd0] sm:$0xff]
        %v330 = vld [vmem:[%s224 + $0xd8] sm:$0xff]
        %v331 = vld [vmem:[%s224 + $0xe0] sm:$0xff]
        %v332 = vld [vmem:[%s224 + $0xe8] sm:$0xff]
        %v333 = vld [vmem:[%s224 + $0xf0] sm:$0xff]
        %v334 = vld [vmem:[%s224 + $0xf8] sm:$0xff]
        %v335 = vld [vmem:[%s224 + $0x100] sm:$0xff]
        %v336 = vld [vmem:[%s224 + $0x108] sm:$0xff]
        %v337 = vld [vmem:[%s224 + $0x110] sm:$0xff]
        %v338 = vld [vmem:[%s224 + $0x118] sm:$0xff]
        %v339 = vld [vmem:[%s224 + $0x120] sm:$0xff]
        %v340 = vld [vmem:[%s224 + $0x128] sm:$0xff]
        %v341 = vld [vmem:[%s224 + $0x130] sm:$0xff]
        %v342 = vld [vmem:[%s224 + $0x138] sm:$0xff]
        %v343 = vld [vmem:[%s224 + $0x140] sm:$0xff]
        %v344 = vld [vmem:[%s224 + $0x148] sm:$0xff]
        %v345 = vld [vmem:[%s224 + $0x150] sm:$0xff]
        %v346 = vld [vmem:[%s224 + $0x158] sm:$0xff]
        %v347 = vld [vmem:[%s224 + $0x160] sm:$0xff]
        %v348 = vld [vmem:[%s224 + $0x168] sm:$0xff]
        %v349 = vld [vmem:[%s224 + $0x170] sm:$0xff]
        %v350 = vld [vmem:[%s224 + $0x178] sm:$0xff]
        %v351 = vld [vmem:[%s224 + $0x180] sm:$0xff]
        %v352 = vld [vmem:[%s224 + $0x188] sm:$0xff]
        %v353 = vld [vmem:[%s224 + $0x190] sm:$0xff]
        %v354 = vld [vmem:[%s224 + $0x198] sm:$0xff]
        %v355 = vld [vmem:[%s224 + $0x1a0] sm:$0xff]
        %v356 = vld [vmem:[%s224 + $0x1a8] sm:$0xff]
        %v357 = vld [vmem:[%s224 + $0x1b0] sm:$0xff]
        %v358 = vld [vmem:[%s224 + $0x1b8] sm:$0xff]
        %v359 = vld [vmem:[%s224 + $0x1c0] sm:$0xff]
        %v360 = vld [vmem:[%s224 + $0x1c8] sm:$0xff]
        %v361 = vld [vmem:[%s224 + $0x1d0] sm:$0xff]
        %v362 = vld [vmem:[%s224 + $0x1d8] sm:$0xff]
        %v363 = vld [vmem:[%s224 + $0x1e0] sm:$0xff]
        %v364 = vld [vmem:[%s224 + $0x1e8] sm:$0xff]
        %v365 = vld [vmem:[%s224 + $0x1f0] sm:$0xff]
        %v366 = vld [vmem:[%s224 + $0x1f8] sm:$0xff]
        %v367 = vld [vmem:[%s224 + $0x200] sm:$0xff]
        %v368 = vld [vmem:[%s224 + $0x208] sm:$0xff]
        %v369 = vld [vmem:[%s224 + $0x210] sm:$0xff]
        %v370 = vld [vmem:[%s224 + $0x218] sm:$0xff]
        %v371 = vld [vmem:[%s224 + $0x220] sm:$0xff]
        %v372 = vld [vmem:[%s224 + $0x228] sm:$0xff]
        %v373 = vld [vmem:[%s224 + $0x230] sm:$0xff]
        %v374 = vld [vmem:[%s224 + $0x238] sm:$0xff]
        %v375 = vld [vmem:[%s224 + $0x240] sm:$0xff]
        %v376 = vld [vmem:[%s224 + $0x248] sm:$0xff]
        %v377 = vld [vmem:[%s224 + $0x250] sm:$0xff]
        %v378 = vld [vmem:[%s224 + $0x258] sm:$0xff]
        %v379 = vld [vmem:[%s224 + $0x260] sm:$0xff]
        %v380 = vld [vmem:[%s224 + $0x268] sm:$0xff]
        %v381 = vld [vmem:[%s224 + $0x270] sm:$0xff]
        %v382 = vld [vmem:[%s224 + $0x278] sm:$0xff]
        %v383 = vld [vmem:[%s224 + $0x280] sm:$0xff]
        %v384 = vld [vmem:[%s224 + $0x288] sm:$0xff]
        %v385 = vld [vmem:[%s224 + $0x290] sm:$0xff]
        %v386 = vld [vmem:[%s224 + $0x298] sm:$0xff]
        %v387 = vld [vmem:[%s224 + $0x2a0] sm:$0xff]
        %v388 = vld [vmem:[%s224 + $0x2a8] sm:$0xff]
        %v389 = vld [vmem:[%s224 + $0x2b0] sm:$0xff]
        %v390 = vld [vmem:[%s224 + $0x2b8] sm:$0xff]
        %v391 = vld [vmem:[%s224 + $0x2c0] sm:$0xff]
        %v392 = vld [vmem:[%s224 + $0x2c8] sm:$0xff]
        %v393 = vld [vmem:[%s224 + $0x2d0] sm:$0xff]
        %v394 = vld [vmem:[%s224 + $0x2d8] sm:$0xff]
        %v395 = vld [vmem:[%s224 + $0x2e0] sm:$0xff]
        %v396 = vld [vmem:[%s224 + $0x2e8] sm:$0xff]
        %v397 = vld [vmem:[%s224 + $0x2f0] sm:$0xff]
        %v398 = vld [vmem:[%s224 + $0x2f8] sm:$0xff]
        %v399 = vld [vmem:[%s224 + $0x300] sm:$0xff]
        %v400 = vld [vmem:[%s224 + $0x308] sm:$0xff]
        %v401 = vld [vmem:[%s224 + $0x310] sm:$0xff]
        %v402 = vld [vmem:[%s224 + $0x318] sm:$0xff]
        %v403 = vld [vmem:[%s224 + $0x320] sm:$0xff]
        %v404 = vld [vmem:[%s224 + $0x328] sm:$0xff]
        %v405 = vld [vmem:[%s224 + $0x330] sm:$0xff]
        %v406 = vld [vmem:[%s224 + $0x338] sm:$0xff]
        %v407 = vld [vmem:[%s224 + $0x340] sm:$0xff]
        %v408 = vld [vmem:[%s224 + $0x348] sm:$0xff]
        %v409 = vld [vmem:[%s224 + $0x350] sm:$0xff]
        %v410 = vld [vmem:[%s224 + $0x358] sm:$0xff]
        %v411 = vld [vmem:[%s224 + $0x360] sm:$0xff]
        %v412 = vld [vmem:[%s224 + $0x368] sm:$0xff]
        %v413 = vld [vmem:[%s224 + $0x370] sm:$0xff]
        %v414 = vld [vmem:[%s224 + $0x378] sm:$0xff]
        %v415 = vld [vmem:[%s224 + $0x380] sm:$0xff]
        %v416 = vld [vmem:[%s224 + $0x388] sm:$0xff]
        %v417 = vld [vmem:[%s224 + $0x390] sm:$0xff]
        %v418 = vld [vmem:[%s224 + $0x398] sm:$0xff]
        %v419 = vld [vmem:[%s224 + $0x3a0] sm:$0xff]
        %v420 = vld [vmem:[%s224 + $0x3a8] sm:$0xff]
        %v421 = vld [vmem:[%s224 + $0x3b0] sm:$0xff]
        %v422 = vld [vmem:[%s224 + $0x3b8] sm:$0xff]
        %v423 = vld [vmem:[%s224 + $0x3c0] sm:$0xff]
        %v424 = vld [vmem:[%s224 + $0x3c8] sm:$0xff]
        %v425 = vld [vmem:[%s224 + $0x3d0] sm:$0xff]
        %v426 = vld [vmem:[%s224 + $0x3d8] sm:$0xff]
        %v427 = vld [vmem:[%s224 + $0x3e0] sm:$0xff]
        %v428 = vld [vmem:[%s224 + $0x3e8] sm:$0xff]
        %v429 = vld [vmem:[%s224 + $0x3f0] sm:$0xff]
        %v430 = vld [vmem:[%s224 + $0x3f8] sm:$0xff]
        %v559 = vunpack.c.l.b16 %v303
        %v560 = vunpack.c.h.b16 %v303
        %v561 = vunpack.c.l.b16 %v304
        %v562 = vunpack.c.h.b16 %v304
        %v563 = vunpack.c.l.b16 %v305
        %v564 = vunpack.c.h.b16 %v305
        %v565 = vunpack.c.l.b16 %v306
        %v566 = vunpack.c.h.b16 %v306
        %v567 = vunpack.c.l.b16 %v307
        %v568 = vunpack.c.h.b16 %v307
        %v569 = vunpack.c.l.b16 %v308
        %v570 = vunpack.c.h.b16 %v308
        %v571 = vunpack.c.l.b16 %v309
        %v572 = vunpack.c.h.b16 %v309
        %v573 = vunpack.c.l.b16 %v310
        %v574 = vunpack.c.h.b16 %v310
        %v575 = vunpack.c.l.b16 %v311
        %v576 = vunpack.c.h.b16 %v311
        %v577 = vunpack.c.l.b16 %v312
        %v578 = vunpack.c.h.b16 %v312
        %v579 = vunpack.c.l.b16 %v313
        %v580 = vunpack.c.h.b16 %v313
        %v581 = vunpack.c.l.b16 %v314
        %v582 = vunpack.c.h.b16 %v314
        %v583 = vunpack.c.l.b16 %v315
        %v584 = vunpack.c.h.b16 %v315
        %v585 = vunpack.c.l.b16 %v316
        %v586 = vunpack.c.h.b16 %v316
        %v587 = vunpack.c.l.b16 %v317
        %v588 = vunpack.c.h.b16 %v317
        %v589 = vunpack.c.l.b16 %v318
        %v590 = vunpack.c.h.b16 %v318
        %v591 = vunpack.c.l.b16 %v319
        %v592 = vunpack.c.h.b16 %v319
        %v593 = vunpack.c.l.b16 %v320
        %v594 = vunpack.c.h.b16 %v320
        %v595 = vunpack.c.l.b16 %v321
        %v596 = vunpack.c.h.b16 %v321
        %v597 = vunpack.c.l.b16 %v322
        %v598 = vunpack.c.h.b16 %v322
        %v599 = vunpack.c.l.b16 %v323
        %v600 = vunpack.c.h.b16 %v323
        %v601 = vunpack.c.l.b16 %v324
        %v602 = vunpack.c.h.b16 %v324
        %v603 = vunpack.c.l.b16 %v325
        %v604 = vunpack.c.h.b16 %v325
        %v605 = vunpack.c.l.b16 %v326
        %v606 = vunpack.c.h.b16 %v326
        %v607 = vunpack.c.l.b16 %v327
        %v608 = vunpack.c.h.b16 %v327
        %v609 = vunpack.c.l.b16 %v328
        %v610 = vunpack.c.h.b16 %v328
        %v611 = vunpack.c.l.b16 %v329
        %v612 = vunpack.c.h.b16 %v329
        %v613 = vunpack.c.l.b16 %v330
        %v614 = vunpack.c.h.b16 %v330
        %v615 = vunpack.c.l.b16 %v331
        %v616 = vunpack.c.h.b16 %v331
        %v617 = vunpack.c.l.b16 %v332
        %v618 = vunpack.c.h.b16 %v332
        %v619 = vunpack.c.l.b16 %v333
        %v620 = vunpack.c.h.b16 %v333
        %v621 = vunpack.c.l.b16 %v334
        %v622 = vunpack.c.h.b16 %v334
        %v623 = vunpack.c.l.b16 %v335
        %v624 = vunpack.c.h.b16 %v335
        %v625 = vunpack.c.l.b16 %v336
        %v626 = vunpack.c.h.b16 %v336
        %v627 = vunpack.c.l.b16 %v337
        %v628 = vunpack.c.h.b16 %v337
        %v629 = vunpack.c.l.b16 %v338
        %v630 = vunpack.c.h.b16 %v338
        %v631 = vunpack.c.l.b16 %v339
        %v632 = vunpack.c.h.b16 %v339
        %v633 = vunpack.c.l.b16 %v340
        %v634 = vunpack.c.h.b16 %v340
        %v635 = vunpack.c.l.b16 %v341
        %v636 = vunpack.c.h.b16 %v341
        %v637 = vunpack.c.l.b16 %v342
        %v638 = vunpack.c.h.b16 %v342
        %v639 = vunpack.c.l.b16 %v343
        %v640 = vunpack.c.h.b16 %v343
        %v641 = vunpack.c.l.b16 %v344
        %v642 = vunpack.c.h.b16 %v344
        %v643 = vunpack.c.l.b16 %v345
        %v644 = vunpack.c.h.b16 %v345
        %v645 = vunpack.c.l.b16 %v346
        %v646 = vunpack.c.h.b16 %v346
        %v647 = vunpack.c.l.b16 %v347
        %v648 = vunpack.c.h.b16 %v347
        %v649 = vunpack.c.l.b16 %v348
        %v650 = vunpack.c.h.b16 %v348
        %v651 = vunpack.c.l.b16 %v349
        %v652 = vunpack.c.h.b16 %v349
        %v653 = vunpack.c.l.b16 %v350
        %v654 = vunpack.c.h.b16 %v350
        %v655 = vunpack.c.l.b16 %v351
        %v656 = vunpack.c.h.b16 %v351
        %v657 = vunpack.c.l.b16 %v352
        %v658 = vunpack.c.h.b16 %v352
        %v659 = vunpack.c.l.b16 %v353
        %v660 = vunpack.c.h.b16 %v353
        %v661 = vunpack.c.l.b16 %v354
        %v662 = vunpack.c.h.b16 %v354
        %v663 = vunpack.c.l.b16 %v355
        %v664 = vunpack.c.h.b16 %v355
        %v665 = vunpack.c.l.b16 %v356
        %v666 = vunpack.c.h.b16 %v356
        %v667 = vunpack.c.l.b16 %v357
        %v668 = vunpack.c.h.b16 %v357
        %v669 = vunpack.c.l.b16 %v358
        %v670 = vunpack.c.h.b16 %v358
        %v671 = vunpack.c.l.b16 %v359
        %v672 = vunpack.c.h.b16 %v359
        %v673 = vunpack.c.l.b16 %v360
        %v674 = vunpack.c.h.b16 %v360
        %v675 = vunpack.c.l.b16 %v361
        %v676 = vunpack.c.h.b16 %v361
        %v677 = vunpack.c.l.b16 %v362
        %v678 = vunpack.c.h.b16 %v362
        %v679 = vunpack.c.l.b16 %v363
        %v680 = vunpack.c.h.b16 %v363
        %v681 = vunpack.c.l.b16 %v364
        %v682 = vunpack.c.h.b16 %v364
        %v683 = vunpack.c.l.b16 %v365
        %v684 = vunpack.c.h.b16 %v365
        %v685 = vunpack.c.l.b16 %v366
        %v686 = vunpack.c.h.b16 %v366
        %v687 = vunpack.c.l.b16 %v367
        %v688 = vunpack.c.h.b16 %v367
        %v689 = vunpack.c.l.b16 %v368
        %v690 = vunpack.c.h.b16 %v368
        %v691 = vunpack.c.l.b16 %v369
        %v692 = vunpack.c.h.b16 %v369
        %v693 = vunpack.c.l.b16 %v370
        %v694 = vunpack.c.h.b16 %v370
        %v695 = vunpack.c.l.b16 %v371
        %v696 = vunpack.c.h.b16 %v371
        %v697 = vunpack.c.l.b16 %v372
        %v698 = vunpack.c.h.b16 %v372
        %v699 = vunpack.c.l.b16 %v373
        %v700 = vunpack.c.h.b16 %v373
        %v701 = vunpack.c.l.b16 %v374
        %v702 = vunpack.c.h.b16 %v374
        %v703 = vunpack.c.l.b16 %v375
        %v704 = vunpack.c.h.b16 %v375
        %v705 = vunpack.c.l.b16 %v376
        %v706 = vunpack.c.h.b16 %v376
        %v707 = vunpack.c.l.b16 %v377
        %v708 = vunpack.c.h.b16 %v377
        %v709 = vunpack.c.l.b16 %v378
        %v710 = vunpack.c.h.b16 %v378
        %v711 = vunpack.c.l.b16 %v379
        %v712 = vunpack.c.h.b16 %v379
        %v713 = vunpack.c.l.b16 %v380
        %v714 = vunpack.c.h.b16 %v380
        %v715 = vunpack.c.l.b16 %v381
        %v716 = vunpack.c.h.b16 %v381
        %v717 = vunpack.c.l.b16 %v382
        %v718 = vunpack.c.h.b16 %v382
        %v719 = vunpack.c.l.b16 %v383
        %v720 = vunpack.c.h.b16 %v383
        %v721 = vunpack.c.l.b16 %v384
        %v722 = vunpack.c.h.b16 %v384
        %v723 = vunpack.c.l.b16 %v385
        %v724 = vunpack.c.h.b16 %v385
        %v725 = vunpack.c.l.b16 %v386
        %v726 = vunpack.c.h.b16 %v386
        %v727 = vunpack.c.l.b16 %v387
        %v728 = vunpack.c.h.b16 %v387
        %v729 = vunpack.c.l.b16 %v388
        %v730 = vunpack.c.h.b16 %v388
        %v731 = vunpack.c.l.b16 %v389
        %v732 = vunpack.c.h.b16 %v389
        %v733 = vunpack.c.l.b16 %v390
        %v734 = vunpack.c.h.b16 %v390
        %v735 = vunpack.c.l.b16 %v391
        %v736 = vunpack.c.h.b16 %v391
        %v737 = vunpack.c.l.b16 %v392
        %v738 = vunpack.c.h.b16 %v392
        %v739 = vunpack.c.l.b16 %v393
        %v740 = vunpack.c.h.b16 %v393
        %v741 = vunpack.c.l.b16 %v394
        %v742 = vunpack.c.h.b16 %v394
        %v743 = vunpack.c.l.b16 %v395
        %v744 = vunpack.c.h.b16 %v395
        %v745 = vunpack.c.l.b16 %v396
        %v746 = vunpack.c.h.b16 %v396
        %v747 = vunpack.c.l.b16 %v397
        %v748 = vunpack.c.h.b16 %v397
        %v749 = vunpack.c.l.b16 %v398
        %v750 = vunpack.c.h.b16 %v398
        %v751 = vunpack.c.l.b16 %v399
        %v752 = vunpack.c.h.b16 %v399
        %v753 = vunpack.c.l.b16 %v400
        %v754 = vunpack.c.h.b16 %v400
        %v755 = vunpack.c.l.b16 %v401
        %v756 = vunpack.c.h.b16 %v401
        %v757 = vunpack.c.l.b16 %v402
        %v758 = vunpack.c.h.b16 %v402
        %v759 = vunpack.c.l.b16 %v403
        %v760 = vunpack.c.h.b16 %v403
        %v761 = vunpack.c.l.b16 %v404
        %v762 = vunpack.c.h.b16 %v404
        %v763 = vunpack.c.l.b16 %v405
        %v764 = vunpack.c.h.b16 %v405
        %v765 = vunpack.c.l.b16 %v406
        %v766 = vunpack.c.h.b16 %v406
        %v767 = vunpack.c.l.b16 %v407
        %v768 = vunpack.c.h.b16 %v407
        %v769 = vunpack.c.l.b16 %v408
        %v770 = vunpack.c.h.b16 %v408
        %v771 = vunpack.c.l.b16 %v409
        %v772 = vunpack.c.h.b16 %v409
        %v773 = vunpack.c.l.b16 %v410
        %v774 = vunpack.c.h.b16 %v410
        %v775 = vunpack.c.l.b16 %v411
        %v776 = vunpack.c.h.b16 %v411
        %v777 = vunpack.c.l.b16 %v412
        %v778 = vunpack.c.h.b16 %v412
        %v779 = vunpack.c.l.b16 %v413
        %v780 = vunpack.c.h.b16 %v413
        %v781 = vunpack.c.l.b16 %v414
        %v782 = vunpack.c.h.b16 %v414
        %v783 = vunpack.c.l.b16 %v415
        %v784 = vunpack.c.h.b16 %v415
        %v785 = vunpack.c.l.b16 %v416
        %v786 = vunpack.c.h.b16 %v416
        %v787 = vunpack.c.l.b16 %v417
        %v788 = vunpack.c.h.b16 %v417
        %v789 = vunpack.c.l.b16 %v418
        %v790 = vunpack.c.h.b16 %v418
        %v791 = vunpack.c.l.b16 %v419
        %v792 = vunpack.c.h.b16 %v419
        %v793 = vunpack.c.l.b16 %v420
        %v794 = vunpack.c.h.b16 %v420
        %v795 = vunpack.c.l.b16 %v421
        %v796 = vunpack.c.h.b16 %v421
        %v797 = vunpack.c.l.b16 %v422
        %v798 = vunpack.c.h.b16 %v422
        %v799 = vunpack.c.l.b16 %v423
        %v800 = vunpack.c.h.b16 %v423
        %v801 = vunpack.c.l.b16 %v424
        %v802 = vunpack.c.h.b16 %v424
        %v803 = vunpack.c.l.b16 %v425
        %v804 = vunpack.c.h.b16 %v425
        %v805 = vunpack.c.l.b16 %v426
        %v806 = vunpack.c.h.b16 %v426
        %v807 = vunpack.c.l.b16 %v427
        %v808 = vunpack.c.h.b16 %v427
        %v809 = vunpack.c.l.b16 %v428
        %v810 = vunpack.c.h.b16 %v428
        %v811 = vunpack.c.l.b16 %v429
        %v812 = vunpack.c.h.b16 %v429
        %v813 = vunpack.c.l.b16 %v430
        %v814 = vunpack.c.h.b16 %v430
        %v815 = vpack.c.b16 %v575, %v559
        %v816 = vpack.c.b16 %v576, %v560
        %v817 = vpack.c.b16 %v577, %v561
        %v818 = vpack.c.b16 %v578, %v562
        %v819 = vpack.c.b16 %v579, %v563
        %v820 = vpack.c.b16 %v580, %v564
        %v821 = vpack.c.b16 %v581, %v565
        %v822 = vpack.c.b16 %v582, %v566
        %v823 = vpack.c.b16 %v583, %v567
        %v824 = vpack.c.b16 %v584, %v568
        %v825 = vpack.c.b16 %v585, %v569
        %v826 = vpack.c.b16 %v586, %v570
        %v827 = vpack.c.b16 %v587, %v571
        %v828 = vpack.c.b16 %v588, %v572
        %v829 = vpack.c.b16 %v589, %v573
        %v830 = vpack.c.b16 %v590, %v574
        %v831 = vpack.c.b16 %v607, %v591
        %v832 = vpack.c.b16 %v608, %v592
        %v833 = vpack.c.b16 %v609, %v593
        %v834 = vpack.c.b16 %v610, %v594
        %v835 = vpack.c.b16 %v611, %v595
        %v836 = vpack.c.b16 %v612, %v596
        %v837 = vpack.c.b16 %v613, %v597
        %v838 = vpack.c.b16 %v614, %v598
        %v839 = vpack.c.b16 %v615, %v599
        %v840 = vpack.c.b16 %v616, %v600
        %v841 = vpack.c.b16 %v617, %v601
        %v842 = vpack.c.b16 %v618, %v602
        %v843 = vpack.c.b16 %v619, %v603
        %v844 = vpack.c.b16 %v620, %v604
        %v845 = vpack.c.b16 %v621, %v605
        %v846 = vpack.c.b16 %v622, %v606
        %v847 = vpack.c.b16 %v639, %v623
        %v848 = vpack.c.b16 %v640, %v624
        %v849 = vpack.c.b16 %v641, %v625
        %v850 = vpack.c.b16 %v642, %v626
        %v851 = vpack.c.b16 %v643, %v627
        %v852 = vpack.c.b16 %v644, %v628
        %v853 = vpack.c.b16 %v645, %v629
        %v854 = vpack.c.b16 %v646, %v630
        %v855 = vpack.c.b16 %v647, %v631
        %v856 = vpack.c.b16 %v648, %v632
        %v857 = vpack.c.b16 %v649, %v633
        %v858 = vpack.c.b16 %v650, %v634
        %v859 = vpack.c.b16 %v651, %v635
        %v860 = vpack.c.b16 %v652, %v636
        %v861 = vpack.c.b16 %v653, %v637
        %v862 = vpack.c.b16 %v654, %v638
        %v863 = vpack.c.b16 %v671, %v655
        %v864 = vpack.c.b16 %v672, %v656
        %v865 = vpack.c.b16 %v673, %v657
        %v866 = vpack.c.b16 %v674, %v658
        %v867 = vpack.c.b16 %v675, %v659
        %v868 = vpack.c.b16 %v676, %v660
        %v869 = vpack.c.b16 %v677, %v661
        %v870 = vpack.c.b16 %v678, %v662
        %v871 = vpack.c.b16 %v679, %v663
        %v872 = vpack.c.b16 %v680, %v664
        %v873 = vpack.c.b16 %v681, %v665
        %v874 = vpack.c.b16 %v682, %v666
        %v875 = vpack.c.b16 %v683, %v667
        %v876 = vpack.c.b16 %v684, %v668
        %v877 = vpack.c.b16 %v685, %v669
        %v878 = vpack.c.b16 %v686, %v670
        %v879 = vpack.c.b16 %v703, %v687
        %v880 = vpack.c.b16 %v704, %v688
        %v881 = vpack.c.b16 %v705, %v689
        %v882 = vpack.c.b16 %v706, %v690
        %v883 = vpack.c.b16 %v707, %v691
        %v884 = vpack.c.b16 %v708, %v692
        %v885 = vpack.c.b16 %v709, %v693
        %v886 = vpack.c.b16 %v710, %v694
        %v887 = vpack.c.b16 %v711, %v695
        %v888 = vpack.c.b16 %v712, %v696
        %v889 = vpack.c.b16 %v713, %v697
        %v890 = vpack.c.b16 %v714, %v698
        %v891 = vpack.c.b16 %v715, %v699
        %v892 = vpack.c.b16 %v716, %v700
        %v893 = vpack.c.b16 %v717, %v701
        %v894 = vpack.c.b16 %v718, %v702
        %v895 = vpack.c.b16 %v735, %v719
        %v896 = vpack.c.b16 %v736, %v720
        %v897 = vpack.c.b16 %v737, %v721
        %v898 = vpack.c.b16 %v738, %v722
        %v899 = vpack.c.b16 %v739, %v723
        %v900 = vpack.c.b16 %v740, %v724
        %v901 = vpack.c.b16 %v741, %v725
        %v902 = vpack.c.b16 %v742, %v726
        %v903 = vpack.c.b16 %v743, %v727
        %v904 = vpack.c.b16 %v744, %v728
        %v905 = vpack.c.b16 %v745, %v729
        %v906 = vpack.c.b16 %v746, %v730
        %v907 = vpack.c.b16 %v747, %v731
        %v908 = vpack.c.b16 %v748, %v732
        %v909 = vpack.c.b16 %v749, %v733
        %v910 = vpack.c.b16 %v750, %v734
        %v911 = vpack.c.b16 %v767, %v751
        %v912 = vpack.c.b16 %v768, %v752
        %v913 = vpack.c.b16 %v769, %v753
        %v914 = vpack.c.b16 %v770, %v754
        %v915 = vpack.c.b16 %v771, %v755
        %v916 = vpack.c.b16 %v772, %v756
        %v917 = vpack.c.b16 %v773, %v757
        %v918 = vpack.c.b16 %v774, %v758
        %v919 = vpack.c.b16 %v775, %v759
        %v920 = vpack.c.b16 %v776, %v760
        %v921 = vpack.c.b16 %v777, %v761
        %v922 = vpack.c.b16 %v778, %v762
        %v923 = vpack.c.b16 %v779, %v763
        %v924 = vpack.c.b16 %v780, %v764
        %v925 = vpack.c.b16 %v781, %v765
        %v926 = vpack.c.b16 %v782, %v766
        %v927 = vpack.c.b16 %v799, %v783
        %v928 = vpack.c.b16 %v800, %v784
        %v929 = vpack.c.b16 %v801, %v785
        %v930 = vpack.c.b16 %v802, %v786
        %v931 = vpack.c.b16 %v803, %v787
        %v932 = vpack.c.b16 %v804, %v788
        %v933 = vpack.c.b16 %v805, %v789
        %v934 = vpack.c.b16 %v806, %v790
        %v935 = vpack.c.b16 %v807, %v791
        %v936 = vpack.c.b16 %v808, %v792
        %v937 = vpack.c.b16 %v809, %v793
        %v938 = vpack.c.b16 %v810, %v794
        %v939 = vpack.c.b16 %v811, %v795
        %v940 = vpack.c.b16 %v812, %v796
        %v941 = vpack.c.b16 %v813, %v797
        %v942 = vpack.c.b16 %v814, %v798
        %1071 = vmatprep.subr.bf16.mxu0 %v816
        %1072 = vmatpush1.bf16.msra.mxu0 %v815
        %1073 = vmatprep.subr.bf16.mxu0 %v832
        %1074 = vmatpush1.bf16.msra.mxu0 %v831
        %1075 = vmatprep.subr.bf16.mxu0 %v848
        %1076 = vmatpush1.bf16.msra.mxu0 %v847
        %1077 = vmatprep.subr.bf16.mxu0 %v864
        %1078 = vmatpush1.bf16.msra.mxu0 %v863
        %1079 = vmatprep.subr.bf16.mxu0 %v880
        %1080 = vmatpush1.bf16.msra.mxu0 %v879
        %1081 = vmatprep.subr.bf16.mxu0 %v896
        %1082 = vmatpush1.bf16.msra.mxu0 %v895
        %1083 = vmatprep.subr.bf16.mxu0 %v912
        %1084 = vmatpush1.bf16.msra.mxu0 %v911
        %1085 = vmatprep.subr.bf16.mxu0 %v928
        %1086 = vmatpush1.bf16.msra.mxu0 %v927
        %1087 = vmatprep.subr.bf16.mxu0 0
        %1088 = vmatpush1.bf16.msra.mxu0 0
        %1089 = vmatprep.subr.bf16.mxu0 0
        %1090 = vmatpush1.bf16.msra.mxu0 0
        %1091 = vmatprep.subr.bf16.mxu0 0
        %1092 = vmatpush1.bf16.msra.mxu0 0
        %1093 = vmatprep.subr.bf16.mxu0 0
        %1094 = vmatpush1.bf16.msra.mxu0 0
        %1095 = vmatprep.subr.bf16.mxu0 0
        %1096 = vmatpush1.bf16.msra.mxu0 0
        %1097 = vmatprep.subr.bf16.mxu0 0
        %1098 = vmatpush1.bf16.msra.mxu0 0
        %1099 = vmatprep.subr.bf16.mxu0 0
        %1100 = vmatpush1.bf16.msra.mxu0 0
        %1101 = vmatprep.subr.bf16.mxu0 0
        %1102 = vmatpush1.bf16.msra.mxu0 0
        %1103 = vmatprep.mubr.bf16.mxu0 0
        %1104 = vmatmul.mubr.bf16.gmra.mrb[0].mxu0 %v302
        %v1105 = vpop.f32.mrb[0].mxu0
        %v1106 = vadd.f32 0.0, %v1105
        %v1107 = vpop.f32.mrb[0].mxu0
        %v1108 = vadd.f32 0.0, %v1107
        %v1109 = vpop.f32.mrb[0].mxu0
        %v1110 = vpop.f32.mrb[0].mxu0
        %1111 = vdwg.mxu0
        %1112 = vmatprep.subr.bf16.mxu0 %v818
        %1113 = vmatpush1.bf16.msra.mxu0 %v817
        %1114 = vmatprep.subr.bf16.mxu0 %v834
        %1115 = vmatpush1.bf16.msra.mxu0 %v833
        %1116 = vmatprep.subr.bf16.mxu0 %v850
        %1117 = vmatpush1.bf16.msra.mxu0 %v849
        %1118 = vmatprep.subr.bf16.mxu0 %v866
        %1119 = vmatpush1.bf16.msra.mxu0 %v865
        %1120 = vmatprep.subr.bf16.mxu0 %v882
        %1121 = vmatpush1.bf16.msra.mxu0 %v881
        %1122 = vmatprep.subr.bf16.mxu0 %v898
        %1123 = vmatpush1.bf16.msra.mxu0 %v897
        %1124 = vmatprep.subr.bf16.mxu0 %v914
        %1125 = vmatpush1.bf16.msra.mxu0 %v913
        %1126 = vmatprep.subr.bf16.mxu0 %v930
        %1127 = vmatpush1.bf16.msra.mxu0 %v929
        %1128 = vmatprep.subr.bf16.mxu0 0
        %1129 = vmatpush1.bf16.msra.mxu0 0
        %1130 = vmatprep.subr.bf16.mxu0 0
        %1131 = vmatpush1.bf16.msra.mxu0 0
        %1132 = vmatprep.subr.bf16.mxu0 0
        %1133 = vmatpush1.bf16.msra.mxu0 0
        %1134 = vmatprep.subr.bf16.mxu0 0
        %1135 = vmatpush1.bf16.msra.mxu0 0
        %1136 = vmatprep.subr.bf16.mxu0 0
        %1137 = vmatpush1.bf16.msra.mxu0 0
        %1138 = vmatprep.subr.bf16.mxu0 0
        %1139 = vmatpush1.bf16.msra.mxu0 0
        %1140 = vmatprep.subr.bf16.mxu0 0
        %1141 = vmatpush1.bf16.msra.mxu0 0
        %1142 = vmatprep.subr.bf16.mxu0 0
        %1143 = vmatpush1.bf16.msra.mxu0 0
        %1144 = vmatprep.mubr.bf16.mxu0 0
        %1145 = vmatmul.mubr.bf16.gmra.mrb[0].mxu0 %v302
        %v1146 = vpop.f32.mrb[0].mxu0
        %v1147 = vadd.f32 0.0, %v1146
        %v1148 = vpop.f32.mrb[0].mxu0
        %v1149 = vadd.f32 0.0, %v1148
        %v1150 = vpop.f32.mrb[0].mxu0
        %v1151 = vpop.f32.mrb[0].mxu0
        %1152 = vdwg.mxu0
        %1153 = vmatprep.subr.bf16.mxu0 %v820
        %1154 = vmatpush1.bf16.msra.mxu0 %v819
        %1155 = vmatprep.subr.bf16.mxu0 %v836
        %1156 = vmatpush1.bf16.msra.mxu0 %v835
        %1157 = vmatprep.subr.bf16.mxu0 %v852
        %1158 = vmatpush1.bf16.msra.mxu0 %v851
        %1159 = vmatprep.subr.bf16.mxu0 %v868
        %1160 = vmatpush1.bf16.msra.mxu0 %v867
        %1161 = vmatprep.subr.bf16.mxu0 %v884
        %1162 = vmatpush1.bf16.msra.mxu0 %v883
        %1163 = vmatprep.subr.bf16.mxu0 %v900
        %1164 = vmatpush1.bf16.msra.mxu0 %v899
        %1165 = vmatprep.subr.bf16.mxu0 %v916
        %1166 = vmatpush1.bf16.msra.mxu0 %v915
        %1167 = vmatprep.subr.bf16.mxu0 %v932
        %1168 = vmatpush1.bf16.msra.mxu0 %v931
        %1169 = vmatprep.subr.bf16.mxu0 0
        %1170 = vmatpush1.bf16.msra.mxu0 0
        %1171 = vmatprep.subr.bf16.mxu0 0
        %1172 = vmatpush1.bf16.msra.mxu0 0
        %1173 = vmatprep.subr.bf16.mxu0 0
        %1174 = vmatpush1.bf16.msra.mxu0 0
        %1175 = vmatprep.subr.bf16.mxu0 0
        %1176 = vmatpush1.bf16.msra.mxu0 0
        %1177 = vmatprep.subr.bf16.mxu0 0
        %1178 = vmatpush1.bf16.msra.mxu0 0
        %1179 = vmatprep.subr.bf16.mxu0 0
        %1180 = vmatpush1.bf16.msra.mxu0 0
        %1181 = vmatprep.subr.bf16.mxu0 0
        %1182 = vmatpush1.bf16.msra.mxu0 0
        %1183 = vmatprep.subr.bf16.mxu0 0
        %1184 = vmatpush1.bf16.msra.mxu0 0
        %1185 = vmatprep.mubr.bf16.mxu0 0
        %1186 = vmatmul.mubr.bf16.gmra.mrb[0].mxu0 %v302
        %v1187 = vpop.f32.mrb[0].mxu0
        %v1188 = vadd.f32 0.0, %v1187
        %v1189 = vpop.f32.mrb[0].mxu0
        %v1190 = vadd.f32 0.0, %v1189
        %v1191 = vpop.f32.mrb[0].mxu0
        %v1192 = vpop.f32.mrb[0].mxu0
        %1193 = vdwg.mxu0
        %1194 = vmatprep.subr.bf16.mxu0 %v822
        %1195 = vmatpush1.bf16.msra.mxu0 %v821
        %1196 = vmatprep.subr.bf16.mxu0 %v838
        %1197 = vmatpush1.bf16.msra.mxu0 %v837
        %1198 = vmatprep.subr.bf16.mxu0 %v854
        %1199 = vmatpush1.bf16.msra.mxu0 %v853
        %1200 = vmatprep.subr.bf16.mxu0 %v870
        %1201 = vmatpush1.bf16.msra.mxu0 %v869
        %1202 = vmatprep.subr.bf16.mxu0 %v886
        %1203 = vmatpush1.bf16.msra.mxu0 %v885
        %1204 = vmatprep.subr.bf16.mxu0 %v902
        %1205 = vmatpush1.bf16.msra.mxu0 %v901
        %1206 = vmatprep.subr.bf16.mxu0 %v918
        %1207 = vmatpush1.bf16.msra.mxu0 %v917
        %1208 = vmatprep.subr.bf16.mxu0 %v934
        %1209 = vmatpush1.bf16.msra.mxu0 %v933
        %1210 = vmatprep.subr.bf16.mxu0 0
        %1211 = vmatpush1.bf16.msra.mxu0 0
        %1212 = vmatprep.subr.bf16.mxu0 0
        %1213 = vmatpush1.bf16.msra.mxu0 0
        %1214 = vmatprep.subr.bf16.mxu0 0
        %1215 = vmatpush1.bf16.msra.mxu0 0
        %1216 = vmatprep.subr.bf16.mxu0 0
        %1217 = vmatpush1.bf16.msra.mxu0 0
        %1218 = vmatprep.subr.bf16.mxu0 0
        %1219 = vmatpush1.bf16.msra.mxu0 0
        %1220 = vmatprep.subr.bf16.mxu0 0
        %1221 = vmatpush1.bf16.msra.mxu0 0
        %1222 = vmatprep.subr.bf16.mxu0 0
        %1223 = vmatpush1.bf16.msra.mxu0 0
        %1224 = vmatprep.subr.bf16.mxu0 0
        %1225 = vmatpush1.bf16.msra.mxu0 0
        %1226 = vmatprep.mubr.bf16.mxu0 0
        %1227 = vmatmul.mubr.bf16.gmra.mrb[0].mxu0 %v302
        %v1228 = vpop.f32.mrb[0].mxu0
        %v1229 = vadd.f32 0.0, %v1228
        %v1230 = vpop.f32.mrb[0].mxu0
        %v1231 = vadd.f32 0.0, %v1230
        %v1232 = vpop.f32.mrb[0].mxu0
        %v1233 = vpop.f32.mrb[0].mxu0
        %1234 = vdwg.mxu0
        %1235 = vmatprep.subr.bf16.mxu0 %v824
        %1236 = vmatpush1.bf16.msra.mxu0 %v823
        %1237 = vmatprep.subr.bf16.mxu0 %v840
        %1238 = vmatpush1.bf16.msra.mxu0 %v839
        %1239 = vmatprep.subr.bf16.mxu0 %v856
        %1240 = vmatpush1.bf16.msra.mxu0 %v855
        %1241 = vmatprep.subr.bf16.mxu0 %v872
        %1242 = vmatpush1.bf16.msra.mxu0 %v871
        %1243 = vmatprep.subr.bf16.mxu0 %v888
        %1244 = vmatpush1.bf16.msra.mxu0 %v887
        %1245 = vmatprep.subr.bf16.mxu0 %v904
        %1246 = vmatpush1.bf16.msra.mxu0 %v903
        %1247 = vmatprep.subr.bf16.mxu0 %v920
        %1248 = vmatpush1.bf16.msra.mxu0 %v919
        %1249 = vmatprep.subr.bf16.mxu0 %v936
        %1250 = vmatpush1.bf16.msra.mxu0 %v935
        %1251 = vmatprep.subr.bf16.mxu0 0
        %1252 = vmatpush1.bf16.msra.mxu0 0
        %1253 = vmatprep.subr.bf16.mxu0 0
        %1254 = vmatpush1.bf16.msra.mxu0 0
        %1255 = vmatprep.subr.bf16.mxu0 0
        %1256 = vmatpush1.bf16.msra.mxu0 0
        %1257 = vmatprep.subr.bf16.mxu0 0
        %1258 = vmatpush1.bf16.msra.mxu0 0
        %1259 = vmatprep.subr.bf16.mxu0 0
        %1260 = vmatpush1.bf16.msra.mxu0 0
        %1261 = vmatprep.subr.bf16.mxu0 0
        %1262 = vmatpush1.bf16.msra.mxu0 0
        %1263 = vmatprep.subr.bf16.mxu0 0
        %1264 = vmatpush1.bf16.msra.mxu0 0
        %1265 = vmatprep.subr.bf16.mxu0 0
        %1266 = vmatpush1.bf16.msra.mxu0 0
        %1267 = vmatprep.mubr.bf16.mxu0 0
        %1268 = vmatmul.mubr.bf16.gmra.mrb[0].mxu0 %v302
        %v1269 = vpop.f32.mrb[0].mxu0
        %v1270 = vadd.f32 0.0, %v1269
        %v1271 = vpop.f32.mrb[0].mxu0
        %v1272 = vadd.f32 0.0, %v1271
        %v1273 = vpop.f32.mrb[0].mxu0
        %v1274 = vpop.f32.mrb[0].mxu0
        %1275 = vdwg.mxu0
        %1276 = vmatprep.subr.bf16.mxu0 %v826
        %1277 = vmatpush1.bf16.msra.mxu0 %v825
        %1278 = vmatprep.subr.bf16.mxu0 %v842
        %1279 = vmatpush1.bf16.msra.mxu0 %v841
        %1280 = vmatprep.subr.bf16.mxu0 %v858
        %1281 = vmatpush1.bf16.msra.mxu0 %v857
        %1282 = vmatprep.subr.bf16.mxu0 %v874
        %1283 = vmatpush1.bf16.msra.mxu0 %v873
        %1284 = vmatprep.subr.bf16.mxu0 %v890
        %1285 = vmatpush1.bf16.msra.mxu0 %v889
        %1286 = vmatprep.subr.bf16.mxu0 %v906
        %1287 = vmatpush1.bf16.msra.mxu0 %v905
        %1288 = vmatprep.subr.bf16.mxu0 %v922
        %1289 = vmatpush1.bf16.msra.mxu0 %v921
        %1290 = vmatprep.subr.bf16.mxu0 %v938
        %1291 = vmatpush1.bf16.msra.mxu0 %v937
        %1292 = vmatprep.subr.bf16.mxu0 0
        %1293 = vmatpush1.bf16.msra.mxu0 0
        %1294 = vmatprep.subr.bf16.mxu0 0
        %1295 = vmatpush1.bf16.msra.mxu0 0
        %1296 = vmatprep.subr.bf16.mxu0 0
        %1297 = vmatpush1.bf16.msra.mxu0 0
        %1298 = vmatprep.subr.bf16.mxu0 0
        %1299 = vmatpush1.bf16.msra.mxu0 0
        %1300 = vmatprep.subr.bf16.mxu0 0
        %1301 = vmatpush1.bf16.msra.mxu0 0
        %1302 = vmatprep.subr.bf16.mxu0 0
        %1303 = vmatpush1.bf16.msra.mxu0 0
        %1304 = vmatprep.subr.bf16.mxu0 0
        %1305 = vmatpush1.bf16.msra.mxu0 0
        %1306 = vmatprep.subr.bf16.mxu0 0
        %1307 = vmatpush1.bf16.msra.mxu0 0
        %1308 = vmatprep.mubr.bf16.mxu0 0
        %1309 = vmatmul.mubr.bf16.gmra.mrb[0].mxu0 %v302
        %v1310 = vpop.f32.mrb[0].mxu0
        %v1311 = vadd.f32 0.0, %v1310
        %v1312 = vpop.f32.mrb[0].mxu0
        %v1313 = vadd.f32 0.0, %v1312
        %v1314 = vpop.f32.mrb[0].mxu0
        %v1315 = vpop.f32.mrb[0].mxu0
        %1316 = vdwg.mxu0
        %1317 = vmatprep.subr.bf16.mxu0 %v828
        %1318 = vmatpush1.bf16.msra.mxu0 %v827
        %1319 = vmatprep.subr.bf16.mxu0 %v844
        %1320 = vmatpush1.bf16.msra.mxu0 %v843
        %1321 = vmatprep.subr.bf16.mxu0 %v860
        %1322 = vmatpush1.bf16.msra.mxu0 %v859
        %1323 = vmatprep.subr.bf16.mxu0 %v876
        %1324 = vmatpush1.bf16.msra.mxu0 %v875
        %1325 = vmatprep.subr.bf16.mxu0 %v892
        %1326 = vmatpush1.bf16.msra.mxu0 %v891
        %1327 = vmatprep.subr.bf16.mxu0 %v908
        %1328 = vmatpush1.bf16.msra.mxu0 %v907
        %1329 = vmatprep.subr.bf16.mxu0 %v924
        %1330 = vmatpush1.bf16.msra.mxu0 %v923
        %1331 = vmatprep.subr.bf16.mxu0 %v940
        %1332 = vmatpush1.bf16.msra.mxu0 %v939
        %1333 = vmatprep.subr.bf16.mxu0 0
        %1334 = vmatpush1.bf16.msra.mxu0 0
        %1335 = vmatprep.subr.bf16.mxu0 0
        %1336 = vmatpush1.bf16.msra.mxu0 0
        %1337 = vmatprep.subr.bf16.mxu0 0
        %1338 = vmatpush1.bf16.msra.mxu0 0
        %1339 = vmatprep.subr.bf16.mxu0 0
        %1340 = vmatpush1.bf16.msra.mxu0 0
        %1341 = vmatprep.subr.bf16.mxu0 0
        %1342 = vmatpush1.bf16.msra.mxu0 0
        %1343 = vmatprep.subr.bf16.mxu0 0
        %1344 = vmatpush1.bf16.msra.mxu0 0
        %1345 = vmatprep.subr.bf16.mxu0 0
        %1346 = vmatpush1.bf16.msra.mxu0 0
        %1347 = vmatprep.subr.bf16.mxu0 0
        %1348 = vmatpush1.bf16.msra.mxu0 0
        %1349 = vmatprep.mubr.bf16.mxu0 0
        %1350 = vmatmul.mubr.bf16.gmra.mrb[0].mxu0 %v302
        %v1351 = vpop.f32.mrb[0].mxu0
        %v1352 = vadd.f32 0.0, %v1351
        %v1353 = vpop.f32.mrb[0].mxu0
        %v1354 = vadd.f32 0.0, %v1353
        %v1355 = vpop.f32.mrb[0].mxu0
        %v1356 = vpop.f32.mrb[0].mxu0
        %1357 = vdwg.mxu0
        %1358 = vmatprep.subr.bf16.mxu0 %v830
        %1359 = vmatpush1.bf16.msra.mxu0 %v829
        %1360 = vmatprep.subr.bf16.mxu0 %v846
        %1361 = vmatpush1.bf16.msra.mxu0 %v845
        %1362 = vmatprep.subr.bf16.mxu0 %v862
        %1363 = vmatpush1.bf16.msra.mxu0 %v861
        %1364 = vmatprep.subr.bf16.mxu0 %v878
        %1365 = vmatpush1.bf16.msra.mxu0 %v877
        %1366 = vmatprep.subr.bf16.mxu0 %v894
        %1367 = vmatpush1.bf16.msra.mxu0 %v893
        %1368 = vmatprep.subr.bf16.mxu0 %v910
        %1369 = vmatpush1.bf16.msra.mxu0 %v909
        %1370 = vmatprep.subr.bf16.mxu0 %v926
        %1371 = vmatpush1.bf16.msra.mxu0 %v925
        %1372 = vmatprep.subr.bf16.mxu0 %v942
        %1373 = vmatpush1.bf16.msra.mxu0 %v941
        %1374 = vmatprep.subr.bf16.mxu0 0
        %1375 = vmatpush1.bf16.msra.mxu0 0
        %1376 = vmatprep.subr.bf16.mxu0 0
        %1377 = vmatpush1.bf16.msra.mxu0 0
        %1378 = vmatprep.subr.bf16.mxu0 0
        %1379 = vmatpush1.bf16.msra.mxu0 0
        %1380 = vmatprep.subr.bf16.mxu0 0
        %1381 = vmatpush1.bf16.msra.mxu0 0
        %1382 = vmatprep.subr.bf16.mxu0 0
        %1383 = vmatpush1.bf16.msra.mxu0 0
        %1384 = vmatprep.subr.bf16.mxu0 0
        %1385 = vmatpush1.bf16.msra.mxu0 0
        %1386 = vmatprep.subr.bf16.mxu0 0
        %1387 = vmatpush1.bf16.msra.mxu0 0
        %1388 = vmatprep.subr.bf16.mxu0 0
        %1389 = vmatpush1.bf16.msra.mxu0 0
        %1390 = vmatprep.mubr.bf16.mxu0 0
        %1391 = vmatmul.mubr.bf16.gmra.mrb[0].mxu0 %v302
        %v1392 = vpop.f32.mrb[0].mxu0
        %v1393 = vadd.f32 0.0, %v1392
        %v1394 = vpop.f32.mrb[0].mxu0
        %v1395 = vadd.f32 0.0, %v1394
        %v1396 = vpop.f32.mrb[0].mxu0
        %v1397 = vpop.f32.mrb[0].mxu0
        %1398 = vdwg.mxu0
        %v1399 = vadd.f32 %v286, %v1106
        %v1400 = vadd.f32 %v287, %v1108
        %v1401 = vadd.f32 %v288, %v1147
        %v1402 = vadd.f32 %v289, %v1149
        %v1403 = vadd.f32 %v290, %v1188
        %v1404 = vadd.f32 %v291, %v1190
        %v1405 = vadd.f32 %v292, %v1229
        %v1406 = vadd.f32 %v293, %v1231
        %v1407 = vadd.f32 %v294, %v1270
        %v1408 = vadd.f32 %v295, %v1272
        %v1409 = vadd.f32 %v296, %v1311
        %v1410 = vadd.f32 %v297, %v1313
        %v1411 = vadd.f32 %v298, %v1352
        %v1412 = vadd.f32 %v299, %v1354
        %v1413 = vadd.f32 %v300, %v1393
        %v1414 = vadd.f32 %v301, %v1395
        %1415 = vst [vmem:[%s260] sm:$0xff] %v1399
        %1416 = vst [vmem:[%s260 + $0x8] sm:$0xff] %v1400
        %1417 = vst [vmem:[%s260 + $0x10] sm:$0xff] %v1401
        %1418 = vst [vmem:[%s260 + $0x18] sm:$0xff] %v1402
        %1419 = vst [vmem:[%s260 + $0x20] sm:$0xff] %v1403
        %1420 = vst [vmem:[%s260 + $0x28] sm:$0xff] %v1404
        %1421 = vst [vmem:[%s260 + $0x30] sm:$0xff] %v1405
        %1422 = vst [vmem:[%s260 + $0x38] sm:$0xff] %v1406
        %1423 = vst [vmem:[%s260 + $0x40] sm:$0xff] %v1407
        %1424 = vst [vmem:[%s260 + $0x48] sm:$0xff] %v1408
        %1425 = vst [vmem:[%s260 + $0x50] sm:$0xff] %v1409
        %1426 = vst [vmem:[%s260 + $0x58] sm:$0xff] %v1410
        %1427 = vst [vmem:[%s260 + $0x60] sm:$0xff] %v1411
        %1428 = vst [vmem:[%s260 + $0x68] sm:$0xff] %v1412
        %1429 = vst [vmem:[%s260 + $0x70] sm:$0xff] %v1413
        %1430 = vst [vmem:[%s260 + $0x78] sm:$0xff] %v1414
        // Predicated region
        $region49: #{tpu_custom_call.1} parent=31 // pred_check
          %p1431 = pneg %p266
        $region50: #{tpu_custom_call.1} parent=31 // pred_check_branch
          %1433 = sbr.rel (%p1431) target = $region52
        $region51: #{tpu_custom_call.1} parent=31 // pred_region
          %v1434 = vld [vmem:[%s260] sm:$0xff]
          %v1435 = vld [vmem:[%s260 + $0x8] sm:$0xff]
          %v1436 = vld [vmem:[%s260 + $0x10] sm:$0xff]
          %v1437 = vld [vmem:[%s260 + $0x18] sm:$0xff]
          %v1438 = vld [vmem:[%s260 + $0x20] sm:$0xff]
          %v1439 = vld [vmem:[%s260 + $0x28] sm:$0xff]
          %v1440 = vld [vmem:[%s260 + $0x30] sm:$0xff]
          %v1441 = vld [vmem:[%s260 + $0x38] sm:$0xff]
          %v1442 = vld [vmem:[%s260 + $0x40] sm:$0xff]
          %v1443 = vld [vmem:[%s260 + $0x48] sm:$0xff]
          %v1444 = vld [vmem:[%s260 + $0x50] sm:$0xff]
          %v1445 = vld [vmem:[%s260 + $0x58] sm:$0xff]
          %v1446 = vld [vmem:[%s260 + $0x60] sm:$0xff]
          %v1447 = vld [vmem:[%s260 + $0x68] sm:$0xff]
          %v1448 = vld [vmem:[%s260 + $0x70] sm:$0xff]
          %v1449 = vld [vmem:[%s260 + $0x78] sm:$0xff]
          %v1450 = vld [vmem:[%s233] sm:$0xff]
          %v1451 = vld [vmem:[%s233 + $0x8] sm:$0xff]
          %v1454 = vlaneseq
          %v1455 = vshrl.u32 %v1454, 7
          %v1456 = vsub.s32 0, %v1455
          %v1457 = vrot.slane %v1450, %v1456
          %v1458 = vlaneseq
          %v1459 = vshrl.u32 %v1458, 7
          %v1460 = vsub.s32 1, %v1459
          %v1461 = vrot.slane %v1450, %v1460
          %v1462 = vlaneseq
          %v1463 = vshrl.u32 %v1462, 7
          %v1464 = vsub.s32 2, %v1463
          %v1465 = vrot.slane %v1450, %v1464
          %v1466 = vlaneseq
          %v1467 = vshrl.u32 %v1466, 7
          %v1468 = vsub.s32 3, %v1467
          %v1469 = vrot.slane %v1450, %v1468
          %v1470 = vlaneseq
          %v1471 = vshrl.u32 %v1470, 7
          %v1472 = vsub.s32 4, %v1471
          %v1473 = vrot.slane %v1450, %v1472
          %v1474 = vlaneseq
          %v1475 = vshrl.u32 %v1474, 7
          %v1476 = vsub.s32 5, %v1475
          %v1477 = vrot.slane %v1450, %v1476
          %v1478 = vlaneseq
          %v1479 = vshrl.u32 %v1478, 7
          %v1480 = vsub.s32 6, %v1479
          %v1481 = vrot.slane %v1450, %v1480
          %v1482 = vlaneseq
          %v1483 = vshrl.u32 %v1482, 7
          %v1484 = vsub.s32 7, %v1483
          %v1485 = vrot.slane %v1450, %v1484
          %v1486 = vlaneseq
          %v1487 = vshrl.u32 %v1486, 7
          %v1488 = vsub.s32 0, %v1487
          %v1489 = vrot.slane %v1451, %v1488
          %v1490 = vlaneseq
          %v1491 = vshrl.u32 %v1490, 7
          %v1492 = vsub.s32 1, %v1491
          %v1493 = vrot.slane %v1451, %v1492
          %v1494 = vlaneseq
          %v1495 = vshrl.u32 %v1494, 7
          %v1496 = vsub.s32 2, %v1495
          %v1497 = vrot.slane %v1451, %v1496
          %v1498 = vlaneseq
          %v1499 = vshrl.u32 %v1498, 7
          %v1500 = vsub.s32 3, %v1499
          %v1501 = vrot.slane %v1451, %v1500
          %v1502 = vlaneseq
          %v1503 = vshrl.u32 %v1502, 7
          %v1504 = vsub.s32 4, %v1503
          %v1505 = vrot.slane %v1451, %v1504
          %v1506 = vlaneseq
          %v1507 = vshrl.u32 %v1506, 7
          %v1508 = vsub.s32 5, %v1507
          %v1509 = vrot.slane %v1451, %v1508
          %v1510 = vlaneseq
          %v1511 = vshrl.u32 %v1510, 7
          %v1512 = vsub.s32 6, %v1511
          %v1513 = vrot.slane %v1451, %v1512
          %v1514 = vlaneseq
          %v1515 = vshrl.u32 %v1514, 7
          %v1516 = vsub.s32 7, %v1515
          %v1517 = vrot.slane %v1451, %v1516
          %v1534 = vadd.f32 %v1434, %v1457
          %v1535 = vadd.f32 %v1435, %v1461
          %v1536 = vadd.f32 %v1436, %v1465
          %v1537 = vadd.f32 %v1437, %v1469
          %v1538 = vadd.f32 %v1438, %v1473
          %v1539 = vadd.f32 %v1439, %v1477
          %v1540 = vadd.f32 %v1440, %v1481
          %v1541 = vadd.f32 %v1441, %v1485
          %v1542 = vadd.f32 %v1442, %v1489
          %v1543 = vadd.f32 %v1443, %v1493
          %v1544 = vadd.f32 %v1444, %v1497
          %v1545 = vadd.f32 %v1445, %v1501
          %v1546 = vadd.f32 %v1446, %v1505
          %v1547 = vadd.f32 %v1447, %v1509
          %v1548 = vadd.f32 %v1448, %v1513
          %v1549 = vadd.f32 %v1449, %v1517
          %v1550 = vmax.f32 %v1534, 0.0
          %v1551 = vmax.f32 %v1535, 0.0
          %v1552 = vmax.f32 %v1536, 0.0
          %v1553 = vmax.f32 %v1537, 0.0
          %v1554 = vmax.f32 %v1538, 0.0
          %v1555 = vmax.f32 %v1539, 0.0
          %v1556 = vmax.f32 %v1540, 0.0
          %v1557 = vmax.f32 %v1541, 0.0
          %v1558 = vmax.f32 %v1542, 0.0
          %v1559 = vmax.f32 %v1543, 0.0
          %v1560 = vmax.f32 %v1544, 0.0
          %v1561 = vmax.f32 %v1545, 0.0
          %v1562 = vmax.f32 %v1546, 0.0
          %v1563 = vmax.f32 %v1547, 0.0
          %v1564 = vmax.f32 %v1548, 0.0
          %v1565 = vmax.f32 %v1549, 0.0
          %1566 = vst [vmem:[%s260] sm:$0xff] %v1550
          %1567 = vst [vmem:[%s260 + $0x8] sm:$0xff] %v1551
          %1568 = vst [vmem:[%s260 + $0x10] sm:$0xff] %v1552
          %1569 = vst [vmem:[%s260 + $0x18] sm:$0xff] %v1553
          %1570 = vst [vmem:[%s260 + $0x20] sm:$0xff] %v1554
          %1571 = vst [vmem:[%s260 + $0x28] sm:$0xff] %v1555
          %1572 = vst [vmem:[%s260 + $0x30] sm:$0xff] %v1556
          %1573 = vst [vmem:[%s260 + $0x38] sm:$0xff] %v1557
          %1574 = vst [vmem:[%s260 + $0x40] sm:$0xff] %v1558
          %1575 = vst [vmem:[%s260 + $0x48] sm:$0xff] %v1559
          %1576 = vst [vmem:[%s260 + $0x50] sm:$0xff] %v1560
          %1577 = vst [vmem:[%s260 + $0x58] sm:$0xff] %v1561
          %1578 = vst [vmem:[%s260 + $0x60] sm:$0xff] %v1562
          %1579 = vst [vmem:[%s260 + $0x68] sm:$0xff] %v1563
          %1580 = vst [vmem:[%s260 + $0x70] sm:$0xff] %v1564
          %1581 = vst [vmem:[%s260 + $0x78] sm:$0xff] %v1565
        $region52: #{tpu_custom_call.1} parent=31 // pred_fallthru
          _
        %s1582 = sand.u32 %s121, 1
        %s1583 = scalar_lea.sflag [#allocation4], %s1582
        %s1584 = sand.u32 %s121, 1
        %s1585 = smul.addr %s1584, 128
        %s1586 = scalar_lea.vmem [#allocation8], %s1585
        // Predicated region
        $region53: #{tpu_custom_call.1} parent=31 // pred_check
          %p1587 = pneg %p131
        $region54: #{tpu_custom_call.1} parent=31 // pred_check_branch
          %1589 = sbr.rel (%p1587) target = $region56
        $region55: #{tpu_custom_call.1} parent=31 // pred_region
          %s1590 = smul.u32 16, %s25
          %s1592 = ssub.s32 2048, 2048
          %1593 = vsyncadd %s1583, %s1592
          %s1594 = smul.addr %s1590, 128
          %s1595 = scalar_lea.hbm %s3, %s1594
          %s1597 = sshll.u32 %s1586, 4
          %s1598 = int_to_ptr.vmem [resolvable:$true] %s1597
          %1600 = dma.vmem_to_hbm [thread:$0]  %s1598, 2048, %s1595, %s1583
        $region56: #{tpu_custom_call.1} parent=31 // pred_fallthru
          _
      $region32: #{tpu_custom_call.1} parent=5 // pred_fallthru
        _
      %p1601 = scmp.le.s32.totalorder 2, %s16
      // Predicated region
      $region57: #{tpu_custom_call.1} parent=5 // pred_check
        %p1602 = pneg %p1601
      $region58: #{tpu_custom_call.1} parent=5 // pred_check_branch
        %1604 = sbr.rel (%p1602) target = $region60
      $region59: #{tpu_custom_call.1} parent=5 // pred_region
        %s1605 = ssub.s32 %s16, 2
        // Predicated region
        $region61: #{tpu_custom_call.1} parent=59 // pred_check
          %p1606 = pneg %p137
        $region62: #{tpu_custom_call.1} parent=59 // pred_check_branch
          %1608 = sbr.rel (%p1606) target = $region64
        $region63: #{tpu_custom_call.1} parent=59 // pred_region
          %s1609 = sand.u32 %s122, 1
          %s1610 = scalar_lea.sflag [#allocation4], %s1609
          %s1611 = sand.u32 %s122, 1
          %s1612 = smul.addr %s1611, 128
          %s1613 = scalar_lea.vmem [#allocation8], %s1612
          %1614 = dma.done %s1610, 2048
        $region64: #{tpu_custom_call.1} parent=59 // pred_fallthru
          _
      $region60: #{tpu_custom_call.1} parent=5 // pred_fallthru
        _
    $region6: #{tpu_custom_call.1} parent=1 // loop_footer
      %s20 = sadd.s32 1, %s16
    $region7: #{tpu_custom_call.1} parent=1 // loop_footer_branch
      %15 = sbr.rel target = $region3
    $region8: #{tpu_custom_call.1} parent=1 // loop_exit
      _
    %1615 = vsyncpa [#allocation3], 1
    %s1616 = scalar_lea.sflag [#allocation3], 1
    %1617 = vsyncpa %s1616, 1
    %1618 = vsyncpa [#allocation6], 1
    %s1619 = scalar_lea.sflag [#allocation6], 1
    %1620 = vsyncpa %s1619, 1
    %1621 = vsyncpa [#allocation4], 1
    %s1622 = scalar_lea.sflag [#allocation4], 1
    %1623 = vsyncpa %s1622, 1

</llo_original>
